<compile_context>
chip_gen: v5e
topology: v5e:2x2
jax: 0.10.0
libtpu: 0.0.40
codegen_flags: <defaults>
</compile_context>

<pallas_src>
import jax
import jax.numpy as jnp
from jax.experimental import pallas as pl
from jax.experimental.pallas import tpu as pltpu


def _conv_stats_kernel(x_ref, b_ref, y_ref, sum_ref, sq_ref):
    """Row-tile conv matmul + streamed per-lane BN statistics.

    x_ref:   (tm, K*W*Cin)          pre-shifted im2row tile (lane-folded)
    b_ref:   (K*W*Cin, W_out*Cout)  fused block-Toeplitz weight matrix
    y_ref:   (tm, W_out*Cout)       conv output tile (f32 intermediate)
    sum_ref: (1, W_out*Cout)        per-lane running sum   (revisited output)
    sq_ref:  (1, W_out*Cout)        per-lane running sumsq (revisited output)
    """
    @pl.when(pl.program_id(0) == 0)
    def _():
        sum_ref[...] = jnp.zeros_like(sum_ref)
        sq_ref[...] = jnp.zeros_like(sq_ref)

    y = jnp.dot(x_ref[...], b_ref[...], preferred_element_type=jnp.float32)
    y_ref[...] = y.astype(y_ref.dtype)

    # Reduce over rows first (sublane reduction), accumulate lane-resident.
    sum_ref[...] += jnp.sum(y, axis=0, keepdims=True)
    sq_ref[...] += jnp.sum(y * y, axis=0, keepdims=True)
    # TODO(synk): on v7x (2 TensorCores), keep per-core partial sums and combine
    # in the wrapper so this pass can also be marked "parallel".


def _bn_relu_kernel(y_ref, scale_ref, shift_ref, o_ref):
    """Row-tile normalize + affine + ReLU (per-lane replicated scale/shift)."""
    o_ref[...] = jnp.maximum(
        y_ref[...] * scale_ref[...] + shift_ref[...], 0.0).astype(o_ref.dtype)


def _build_toeplitz_weights(weight, W, W_out, pad, dil):
    """Fused block-Toeplitz weight matrix (K*W*Cin, W_out*Cout).

    B[kh*W*Cin + w*Cin + c, wo*Cout + co] =
        sum_kw [w == wo + kw*dil - pad] * weight[co, c, kh, kw]
    Out-of-range W taps never match -> implicit zero W-padding.
    """
    Cout, Cin, K, _ = weight.shape
    w_idx = jnp.arange(W)[:, None]                   # (W, 1)
    wo_idx = jnp.arange(W_out)[None, :]              # (1, W_out)
    B = jnp.zeros((K, W, Cin, W_out, Cout), jnp.float32)
    for kw in range(K):
        sel = (w_idx == wo_idx + (kw * dil - pad)).astype(jnp.float32)          # (W, W_out)
        wk = jnp.transpose(weight[:, :, :, kw], (2, 1, 0)).astype(jnp.float32)  # (K, Cin, Cout)
        B = B + sel[None, :, None, :, None] * wk[:, None, :, None, :]
    return B.reshape(K * W * Cin, W_out * Cout)


def conv_block_forward(x_nchw, weight, bias, gamma, beta, *, pad, dil,
                       eps=1e-5, row_tile=8):
    """PyTorch ConvBlock forward. x_nchw: (N, Cin, H, W); weight: (Cout, Cin, K, K).

    `bias` is accepted for API parity with nn.Conv2d but is not applied: a
    constant per-channel bias cancels exactly under training-mode BatchNorm
    mean subtraction, so adding it is dead compute (perf-review item).
    """
    del bias
    N, Cin, H, W = x_nchw.shape
    Cout, _, K, _ = weight.shape
    Hp = H + 2 * pad
    H_out = H + 2 * pad - dil * (K - 1)
    W_out = W + 2 * pad - dil * (K - 1)
    WC = W * Cin
    WOC = W_out * Cout
    M = N * H_out
    tm = row_tile if M % row_tile == 0 else M

    # NCHW -> NHWC, pad H only (W padding is folded into the Toeplitz weights),
    # fold (W, Cin) onto lanes, and pre-build the K H-shifted views so the
    # kernel lhs tile is a contiguous row window (no in-kernel relayout).
    x = jnp.transpose(x_nchw, (0, 2, 3, 1)).astype(jnp.float32)        # (N,H,W,Cin)
    xp = jnp.pad(x, ((0, 0), (pad, pad), (0, 0), (0, 0))).reshape(N, Hp, WC)
    lhs = jnp.concatenate(
        [xp[:, kh * dil: kh * dil + H_out, :] for kh in range(K)],
        axis=-1).reshape(M, K * WC)                                    # (M, K*WC)

    # TODO(synk): cache B across calls (depends only on weight + spatial size);
    # for real RSSNet layers (Cout >= 128) switch to im2col layout (lanes=Cout,
    # contraction=K*K*Cin) with bf16 matmul operands instead of this W-folded
    # Toeplitz form, which only pays off at small Cout like the demo config.
    B2 = _build_toeplitz_weights(weight, W, W_out, pad, dil)           # (K*WC, WOC)

    # ---- Pass 1: conv + per-lane sum / sumsq, row-tiled, pipelined ----
    y, lane_sum, lane_sq = pl.pallas_call(
        _conv_stats_kernel,
        out_shape=(jax.ShapeDtypeStruct((M, WOC), jnp.float32),
                   jax.ShapeDtypeStruct((1, WOC), jnp.float32),
                   jax.ShapeDtypeStruct((1, WOC), jnp.float32)),
        grid_spec=pltpu.PrefetchScalarGridSpec(
            num_scalar_prefetch=0,
            grid=(M // tm,),
            in_specs=[
                pl.BlockSpec((tm, K * WC), lambda i: (i, 0)),
                pl.BlockSpec((K * WC, WOC), lambda i: (0, 0)),   # resident weights
            ],
            out_specs=[
                pl.BlockSpec((tm, WOC), lambda i: (i, 0)),
                pl.BlockSpec((1, WOC), lambda i: (0, 0)),        # accumulator
                pl.BlockSpec((1, WOC), lambda i: (0, 0)),        # accumulator
            ]),
        compiler_params=pltpu.CompilerParams(
            dimension_semantics=("arbitrary",)),
    )(lhs, B2)

    # ---- Tiny per-channel stats finish (WOC floats) between the passes ----
    count = jnp.float32(M * W_out)                    # N * H_out * W_out
    ch_sum = jnp.sum(lane_sum.reshape(W_out, Cout), axis=0)
    ch_sq = jnp.sum(lane_sq.reshape(W_out, Cout), axis=0)
    mean = ch_sum / count
    var = jnp.maximum(ch_sq / count - mean * mean, 0.0)   # biased, torch training BN
    inv = jax.lax.rsqrt(var + eps)
    scale = gamma.astype(jnp.float32) * inv
    shift = beta.astype(jnp.float32) - mean * scale
    scale_l = jnp.tile(scale, W_out).reshape(1, WOC)
    shift_l = jnp.tile(shift, W_out).reshape(1, WOC)
    # TODO(synk): BatchNorm running_mean/running_var updates (training-time
    # module state, not part of the forward activation) are not materialized.

    # ---- Pass 2: normalize + ReLU, fully parallel over row tiles ----
    out2d = pl.pallas_call(
        _bn_relu_kernel,
        out_shape=jax.ShapeDtypeStruct((M, WOC), jnp.float32),
        grid_spec=pltpu.PrefetchScalarGridSpec(
            num_scalar_prefetch=0,
            grid=(M // tm,),
            in_specs=[
                pl.BlockSpec((tm, WOC), lambda i: (i, 0)),
                pl.BlockSpec((1, WOC), lambda i: (0, 0)),
                pl.BlockSpec((1, WOC), lambda i: (0, 0)),
            ],
            out_specs=pl.BlockSpec((tm, WOC), lambda i: (i, 0))),
        compiler_params=pltpu.CompilerParams(
            dimension_semantics=("parallel",)),
    )(y, scale_l, shift_l)

    out = out2d.reshape(N, H_out, W_out, Cout)
    return jnp.transpose(out, (0, 3, 1, 2)).astype(x_nchw.dtype)       # NCHW


def _reference(x_nchw, weight, bias, gamma, beta, *, pad, dil, eps=1e-5):
    """Pure-JAX reference mirroring Conv2d + training-mode BatchNorm2d + ReLU."""
    y = jax.lax.conv_general_dilated(
        x_nchw, weight,
        window_strides=(1, 1),
        padding=((pad, pad), (pad, pad)),
        rhs_dilation=(dil, dil),
        dimension_numbers=("NCHW", "OIHW", "NCHW"))
    y = y + bias.reshape(1, -1, 1, 1)
    mean = jnp.mean(y, axis=(0, 2, 3), keepdims=True)
    var = jnp.var(y, axis=(0, 2, 3), keepdims=True)     # biased, as in PyTorch training BN
    y = (y - mean) / jnp.sqrt(var + eps)
    y = y * gamma.reshape(1, -1, 1, 1) + beta.reshape(1, -1, 1, 1)
    return jnp.maximum(y, 0.0)


if __name__ == "__main__":
    # ConvBlock(in_ch=4, out_ch=8, k_size=3, pad=2, dil=2) -> spatial size preserved,
    # W_out * Cout = 16 * 8 = 128 (fully lane-dense folded output), M = 32 rows
    # -> 4 pipelined grid steps with row_tile=8.
    N, Cin, H, W = 2, 4, 16, 16
    Cout, K, PAD, DIL = 8, 3, 2, 2

    key = jax.random.PRNGKey(0)
    kx, kw, kb, kg, kbe = jax.random.split(key, 5)
    x = jax.random.normal(kx, (N, Cin, H, W), dtype=jnp.float32)
    weight = 0.1 * jax.random.normal(kw, (Cout, Cin, K, K), dtype=jnp.float32)
    bias = 0.1 * jax.random.normal(kb, (Cout,), dtype=jnp.float32)
    gamma = 1.0 + 0.1 * jax.random.normal(kg, (Cout,), dtype=jnp.float32)
    beta = 0.1 * jax.random.normal(kbe, (Cout,), dtype=jnp.float32)

    out = conv_block_forward(x, weight, bias, gamma, beta, pad=PAD, dil=DIL)
    out = jax.block_until_ready(out)

    ref = _reference(x, weight, bias, gamma, beta, pad=PAD, dil=DIL)
    assert out.shape == (N, Cout, H, W), out.shape
    assert jnp.allclose(out, ref, rtol=1e-4, atol=1e-4), float(jnp.max(jnp.abs(out - ref)))

    print("KERNEL_OK")
</pallas_src>

<mosaic_0001>
module attributes {stable_mosaic.version = 11 : i64} {
  func.func @_conv_stats_kernel(%arg0: i32, %arg1: memref<8x192xf32, #tpu.memory_space<vmem>>, %arg2: memref<192x128xf32, #tpu.memory_space<vmem>>, %arg3: memref<8x128xf32, #tpu.memory_space<vmem>>, %arg4: memref<1x128xf32, #tpu.memory_space<vmem>>, %arg5: memref<1x128xf32, #tpu.memory_space<vmem>>) attributes {dimension_semantics = [#tpu.dimension_semantics<arbitrary>], iteration_bounds = array<i64: 4>, scalar_prefetch = 0 : i64, scratch_operands = 0 : i64, tpu.core_type = #tpu.core_type<tc>, window_params = [{transform_indices = @transform_0, window_bounds = array<i64: 8, 192>}, {pipeline_mode = #tpu.pipeline_mode<synchronous>, transform_indices = @transform_1, window_bounds = array<i64: 192, 128>}, {transform_indices = @transform_2, window_bounds = array<i64: 8, 128>}, {pipeline_mode = #tpu.pipeline_mode<synchronous>, transform_indices = @transform_3, window_bounds = array<i64: 1, 128>}, {pipeline_mode = #tpu.pipeline_mode<synchronous>, transform_indices = @transform_4, window_bounds = array<i64: 1, 128>}]} {
    %c0_i32 = arith.constant 0 : i32
    %0 = arith.cmpi eq, %arg0, %c0_i32 : i32
    %1 = arith.extui %0 : i1 to i32
    %c0_i32_0 = arith.constant 0 : i32
    %2 = arith.cmpi ne, %1, %c0_i32_0 : i32
    scf.if %2 {
      %cst_16 = arith.constant 0.000000e+00 : f32
      %18 = vector.broadcast %cst_16 : f32 to vector<1x128xf32>
      %c0_17 = arith.constant 0 : index
      %c0_18 = arith.constant 0 : index
      %19 = vector.load %arg4[%c0_17, %c0_18] : memref<1x128xf32, #tpu.memory_space<vmem>>, vector<1x128xf32>
      tpu.vector_store %arg4[%c0_17, %c0_18], %18 {strides = array<i32>} : memref<1x128xf32, #tpu.memory_space<vmem>>, vector<1x128xf32>,
      %cst_19 = arith.constant 0.000000e+00 : f32
      %20 = vector.broadcast %cst_19 : f32 to vector<1x128xf32>
      %c0_20 = arith.constant 0 : index
      %c0_21 = arith.constant 0 : index
      %21 = vector.load %arg5[%c0_20, %c0_21] : memref<1x128xf32, #tpu.memory_space<vmem>>, vector<1x128xf32>
      tpu.vector_store %arg5[%c0_20, %c0_21], %20 {strides = array<i32>} : memref<1x128xf32, #tpu.memory_space<vmem>>, vector<1x128xf32>,
    } else {
    }
    %c0 = arith.constant 0 : index
    %c0_1 = arith.constant 0 : index
    %3 = vector.load %arg1[%c0, %c0_1] : memref<8x192xf32, #tpu.memory_space<vmem>>, vector<8x192xf32>
    %c0_2 = arith.constant 0 : index
    %c0_3 = arith.constant 0 : index
    %4 = vector.load %arg2[%c0_2, %c0_3] : memref<192x128xf32, #tpu.memory_space<vmem>>, vector<192x128xf32>
    %cst = arith.constant dense<0.000000e+00> : vector<8x128xf32>
    %5 = tpu.matmul %3, %4, %cst {dimension_numbers = #tpu.dot_dimension_numbers<[1], [0], [0], [1], [0, 0, 1, 1], [], []>} : vector<8x192xf32>, vector<192x128xf32>, vector<8x128xf32> -> vector<8x128xf32>
    %c0_4 = arith.constant 0 : index
    %c0_5 = arith.constant 0 : index
    %6 = vector.load %arg3[%c0_4, %c0_5] : memref<8x128xf32, #tpu.memory_space<vmem>>, vector<8x128xf32>
    tpu.vector_store %arg3[%c0_4, %c0_5], %5 {strides = array<i32>} : memref<8x128xf32, #tpu.memory_space<vmem>>, vector<8x128xf32>,
    %c0_6 = arith.constant 0 : index
    %c0_7 = arith.constant 0 : index
    %7 = vector.load %arg4[%c0_6, %c0_7] : memref<1x128xf32, #tpu.memory_space<vmem>>, vector<1x128xf32>
    %cst_8 = arith.constant dense<0.000000e+00> : vector<128xf32>
    %8 = vector.multi_reduction <add>, %5, %cst_8 [0] : vector<8x128xf32> to vector<128xf32>
    %9 = vector.shape_cast %8 : vector<128xf32> to vector<1x128xf32>
    %10 = arith.addf %7, %9 : vector<1x128xf32>
    %c0_9 = arith.constant 0 : index
    %c0_10 = arith.constant 0 : index
    %11 = vector.load %arg4[%c0_9, %c0_10] : memref<1x128xf32, #tpu.memory_space<vmem>>, vector<1x128xf32>
    tpu.vector_store %arg4[%c0_9, %c0_10], %10 {strides = array<i32>} : memref<1x128xf32, #tpu.memory_space<vmem>>, vector<1x128xf32>,
    %c0_11 = arith.constant 0 : index
    %c0_12 = arith.constant 0 : index
    %12 = vector.load %arg5[%c0_11, %c0_12] : memref<1x128xf32, #tpu.memory_space<vmem>>, vector<1x128xf32>
    %13 = arith.mulf %5, %5 : vector<8x128xf32>
    %cst_13 = arith.constant dense<0.000000e+00> : vector<128xf32>
    %14 = vector.multi_reduction <add>, %13, %cst_13 [0] : vector<8x128xf32> to vector<128xf32>
    %15 = vector.shape_cast %14 : vector<128xf32> to vector<1x128xf32>
    %16 = arith.addf %12, %15 : vector<1x128xf32>
    %c0_14 = arith.constant 0 : index
    %c0_15 = arith.constant 0 : index
    %17 = vector.load %arg5[%c0_14, %c0_15] : memref<1x128xf32, #tpu.memory_space<vmem>>, vector<1x128xf32>
    tpu.vector_store %arg5[%c0_14, %c0_15], %16 {strides = array<i32>} : memref<1x128xf32, #tpu.memory_space<vmem>>, vector<1x128xf32>,
    return
  }
  func.func @transform_0(%arg0: i32) -> (i32, i32) {
    %c0_i32 = arith.constant 0 : i32
    %c0_i32_0 = arith.constant 0 : i32
    return %arg0, %c0_i32 : i32, i32
  }
  func.func @transform_1(%arg0: i32) -> (i32, i32) {
    %c0_i32 = arith.constant 0 : i32
    %c0_i32_0 = arith.constant 0 : i32
    %c0_i32_1 = arith.constant 0 : i32
    return %c0_i32, %c0_i32_0 : i32, i32
  }
  func.func @transform_2(%arg0: i32) -> (i32, i32) {
    %c0_i32 = arith.constant 0 : i32
    %c0_i32_0 = arith.constant 0 : i32
    return %arg0, %c0_i32 : i32, i32
  }
  func.func @transform_3(%arg0: i32) -> (i32, i32) {
    %c0_i32 = arith.constant 0 : i32
    %c0_i32_0 = arith.constant 0 : i32
    %c0_i32_1 = arith.constant 0 : i32
    return %c0_i32, %c0_i32_0 : i32, i32
  }
  func.func @transform_4(%arg0: i32) -> (i32, i32) {
    %c0_i32 = arith.constant 0 : i32
    %c0_i32_0 = arith.constant 0 : i32
    %c0_i32_1 = arith.constant 0 : i32
    return %c0_i32, %c0_i32_0 : i32, i32
  }
}

</mosaic_0001>

<llo_original>
// kernel: tpu_custom_call.1
$region0: #{tpu_custom_call.1}
  #allocation0 [shape = 'u32[]', space=smem, size = 0x4, offset = 0x4, fixed_abs, tag = 'smem constant byte address 0x4 - core index']
  #allocation1 [shape = 'u32[72,128]{1,0:T(1,128)}', space=vmem, size = 0x9000, scoped, tag = 'internal scratch']
  %s0 = inlined_call_operand.hbm [shape: f32[32,192], index: 0, kind: input, shape index: {}]
  %s1 = inlined_call_operand.hbm [shape: f32[192,128], index: 1, kind: input, shape index: {}]
  %s2 = inlined_call_operand.hbm [shape: f32[32,128], index: 2, kind: output, shape index: {0}]
  %s3 = inlined_call_operand.hbm [shape: f32[1,128], index: 3, kind: output, shape index: {1}]
  %s4 = inlined_call_operand.hbm [shape: f32[1,128], index: 4, kind: output, shape index: {2}]
  %5 = xla_tuple %s2, %s3, %s4
  %s6 = sld [smem:[#allocation0]]
  $region69: #{tpu_custom_call.1} parent=0
    _
  %s8 = ssub.s32 1, %s6
  %s9 = scalar_select 0, %s8, %s6
  $region1: #{tpu_custom_call.1} parent=0
    #allocation2 [shape = 'u8[16384]{0}', space=vmem, size = 0x4000, scoped, tag = 'input window, operand 0']
    #allocation3 [shape = 's32[2]{0}', space=sflag, size = 0x8, scoped, tag = 'scoped memory for tpu_custom_call.1']
    #allocation4 [shape = 's32[2]{0}', space=sflag, size = 0x8, scoped, tag = 'scoped memory for tpu_custom_call.1']
    #allocation5 [shape = 'u8[98304]{0}', space=vmem, size = 0x18000, scoped, tag = 'input window, operand 1, single buffered']
    #allocation6 [shape = 's32[1]{0}', space=sflag, size = 0x4, scoped, tag = 'scoped memory for tpu_custom_call.1']
    #allocation7 [shape = 'u8[8192]{0}', space=vmem, size = 0x2000, scoped, tag = 'output window, operand 0']
    #allocation8 [shape = 'u8[512]{0}', space=vmem, size = 0x400, scoped, tag = 'output window, operand 1, single buffered']
    #allocation9 [shape = 's32[1]{0}', space=sflag, size = 0x4, scoped, tag = 'scoped memory for tpu_custom_call.1']
    #allocation10 [shape = 'u8[512]{0}', space=vmem, size = 0x400, scoped, tag = 'output window, operand 2, single buffered']
    %10 = vsyncpa [#allocation3], 0
    %s11 = scalar_lea.sflag [#allocation3], 1
    %12 = vsyncpa %s11, 0
    %13 = vsyncpa [#allocation6], 0
    %14 = vsyncpa [#allocation4], 0
    %s15 = scalar_lea.sflag [#allocation4], 1
    %16 = vsyncpa %s15, 0
    %17 = vsyncpa [#allocation9], 0
    loop: start=0, step=1, limit=6
    $region2: #{tpu_custom_call.1} parent=1 // loop_pre_header
      _
    $region3: #{tpu_custom_call.1} parent=1 // loop_header
      %s19 = sphi 0, %s23
      %p20 = scmp.ge.s32.totalorder %s19, 6
      %s29 = sphi 0, %s31
      %s32 = sphi 0, %s29
      %s33 = sphi 0, %s32
      %s49 = sphi 0, %s33
      %s53 = sphi 0, %s53
      %s55 = sphi 0, %s53
      %s56 = sphi 0, %s55
      %s70 = sphi 0, %s56
      %s76 = sphi 0, %s78
      %s79 = sphi 0, %s76
      %s80 = sphi 0, %s79
      %s96 = sphi 0, %s80
      %s100 = sphi 0, %s100
      %s102 = sphi 0, %s100
      %s103 = sphi 0, %s102
      %s117 = sphi 0, %s103
      %s121 = sphi 0, %s121
      %s123 = sphi 0, %s121
      %s124 = sphi 0, %s123
      %s138 = sphi 0, %s124
    $region4: #{tpu_custom_call.1} parent=1 // loop_header_branch
      %22 = sbr.rel (%p20) target = $region8
    $region5: #{tpu_custom_call.1} parent=1 // loop_body
      %s24 = ssub.s32 %s19, 1
      %s25 = ssub.s32 %s19, 2
      %s26 = sadd.s32 %s19, 1
      %s27 = ssub.s32 %s19, %s26
      %p28 = scmp.eq.s32.totalorder %s27, 0
      %s30 = sadd.s32 %s29, 1
      %s31 = scalar_select %p28, %s29, %s30
      %p34 = pneg %p28
      %p35 = scmp.eq.s32.totalorder %s19, 3
      %p36 = por %p34, %p35
      %p37 = scmp.ne.s32.totalorder %s29, %s32
      %p38 = scmp.eq.s32.totalorder %s19, 0
      %p39 = por %p37, %p38
      %p40 = scmp.ne.s32.totalorder %s29, %s32
      %p41 = scmp.eq.s32.totalorder %s24, 3
      %p42 = por %p40, %p41
      %p43 = scmp.ne.s32.totalorder %s32, %s33
      %p44 = scmp.eq.s32.totalorder %s24, 0
      %p45 = por %p43, %p44
      %p46 = scmp.ne.s32.totalorder %s32, %s33
      %p47 = scmp.eq.s32.totalorder %s25, 3
      %p48 = por %p46, %p47
      %p50 = scmp.ne.s32.totalorder %s33, %s49
      %p51 = scmp.eq.s32.totalorder %s25, 0
      %p52 = por %p50, %p51
      %s54 = sadd.s32 %s53, 1
      %p57 = scmp.eq.s32.totalorder %s19, 3
      %p58 = scmp.ne.s32.totalorder %s53, %s55
      %p59 = scmp.eq.s32.totalorder %s19, 0
      %p60 = por %p58, %p59
      %p61 = scmp.ne.s32.totalorder %s53, %s55
      %p62 = scmp.eq.s32.totalorder %s24, 3
      %p63 = por %p61, %p62
      %p64 = scmp.ne.s32.totalorder %s55, %s56
      %p65 = scmp.eq.s32.totalorder %s24, 0
      %p66 = por %p64, %p65
      %p67 = scmp.ne.s32.totalorder %s55, %s56
      %p68 = scmp.eq.s32.totalorder %s25, 3
      %p69 = por %p67, %p68
      %p71 = scmp.ne.s32.totalorder %s56, %s70
      %p72 = scmp.eq.s32.totalorder %s25, 0
      %p73 = por %p71, %p72
      %s74 = ssub.s32 %s19, %s26
      %p75 = scmp.eq.s32.totalorder %s74, 0
      %s77 = sadd.s32 %s76, 1
      %s78 = scalar_select %p75, %s76, %s77
      %p81 = pneg %p75
      %p82 = scmp.eq.s32.totalorder %s19, 3
      %p83 = por %p81, %p82
      %p84 = scmp.ne.s32.totalorder %s76, %s79
      %p85 = scmp.eq.s32.totalorder %s19, 0
      %p86 = por %p84, %p85
      %p87 = scmp.ne.s32.totalorder %s76, %s79
      %p88 = scmp.eq.s32.totalorder %s24, 3
      %p89 = por %p87, %p88
      %p90 = scmp.ne.s32.totalorder %s79, %s80
      %p91 = scmp.eq.s32.totalorder %s24, 0
      %p92 = por %p90, %p91
      %p93 = scmp.ne.s32.totalorder %s79, %s80
      %p94 = scmp.eq.s32.totalorder %s25, 3
      %p95 = por %p93, %p94
      %p97 = scmp.ne.s32.totalorder %s80, %s96
      %p98 = scmp.eq.s32.totalorder %s25, 0
      %p99 = por %p97, %p98
      %s101 = sadd.s32 %s100, 1
      %p104 = scmp.eq.s32.totalorder %s19, 3
      %p105 = scmp.ne.s32.totalorder %s100, %s102
      %p106 = scmp.eq.s32.totalorder %s19, 0
      %p107 = por %p105, %p106
      %p108 = scmp.ne.s32.totalorder %s100, %s102
      %p109 = scmp.eq.s32.totalorder %s24, 3
      %p110 = por %p108, %p109
      %p111 = scmp.ne.s32.totalorder %s102, %s103
      %p112 = scmp.eq.s32.totalorder %s24, 0
      %p113 = por %p111, %p112
      %p114 = scmp.ne.s32.totalorder %s102, %s103
      %p115 = scmp.eq.s32.totalorder %s25, 3
      %p116 = por %p114, %p115
      %p118 = scmp.ne.s32.totalorder %s103, %s117
      %p119 = scmp.eq.s32.totalorder %s25, 0
      %p120 = por %p118, %p119
      %s122 = sadd.s32 %s121, 1
      %p125 = scmp.eq.s32.totalorder %s19, 3
      %p126 = scmp.ne.s32.totalorder %s121, %s123
      %p127 = scmp.eq.s32.totalorder %s19, 0
      %p128 = por %p126, %p127
      %p129 = scmp.ne.s32.totalorder %s121, %s123
      %p130 = scmp.eq.s32.totalorder %s24, 3
      %p131 = por %p129, %p130
      %p132 = scmp.ne.s32.totalorder %s123, %s124
      %p133 = scmp.eq.s32.totalorder %s24, 0
      %p134 = por %p132, %p133
      %p135 = scmp.ne.s32.totalorder %s123, %s124
      %p136 = scmp.eq.s32.totalorder %s25, 3
      %p137 = por %p135, %p136
      %p139 = scmp.ne.s32.totalorder %s124, %s138
      %p140 = scmp.eq.s32.totalorder %s25, 0
      %p141 = por %p139, %p140
      %p142 = scmp.le.s32.totalorder 1, %s19
      %p143 = scmp.lt.s32.totalorder %s19, 5
      %p144 = pnand %p142, %p143
      %p145 = pneg %p144
      // Predicated region
      $region9: #{tpu_custom_call.1} parent=5 // pred_check
        _
      $region10: #{tpu_custom_call.1} parent=5 // pred_check_branch
        %147 = sbr.rel (%p144) target = $region12
      $region11: #{tpu_custom_call.1} parent=5 // pred_region
        %s148 = ssub.s32 %s19, 1
        // Predicated region
        $region13: #{tpu_custom_call.1} parent=11 // pred_check
          %p149 = pneg %p66
        $region14: #{tpu_custom_call.1} parent=11 // pred_check_branch
          %151 = sbr.rel (%p149) target = $region16
        $region15: #{tpu_custom_call.1} parent=11 // pred_region
          %153 = vsyncadd [#allocation6], 0
          %s154 = sshll.u32 %s1, 4
          %s155 = int_to_ptr.hbm [resolvable:$true] %s154
          %s156 = sshll.u32 [#allocation5], 4
          %s157 = int_to_ptr.vmem [resolvable:$true] %s156
          %162 = dma.hbm_to_vmem [thread:$0]  %s155, 3072, %s157, [#allocation6], 128, 128, 8
        $region16: #{tpu_custom_call.1} parent=11 // pred_fallthru
          _
      $region12: #{tpu_custom_call.1} parent=5 // pred_fallthru
        _
      %p163 = scmp.lt.s32.totalorder %s19, 4
      // Predicated region
      $region17: #{tpu_custom_call.1} parent=5 // pred_check
        %p164 = pneg %p163
      $region18: #{tpu_custom_call.1} parent=5 // pred_check_branch
        %166 = sbr.rel (%p164) target = $region20
      $region19: #{tpu_custom_call.1} parent=5 // pred_region
        // Predicated region
        $region21: #{tpu_custom_call.1} parent=19 // pred_check
          %p167 = pneg %p39
        $region22: #{tpu_custom_call.1} parent=19 // pred_check_branch
          %169 = sbr.rel (%p167) target = $region24
        $region23: #{tpu_custom_call.1} parent=19 // pred_region
          %s170 = sand.u32 %s29, 1
          %s171 = scalar_lea.sflag [#allocation3], %s170
          %s172 = sand.u32 %s29, 1
          %s173 = smul.addr %s172, 16
          %s174 = scalar_lea.vmem [#allocation2], %s173
          %176 = vsyncadd %s171, 0
          %s177 = smul.addr %s19, 2
          %s178 = smul.addr %s177, 8
          %s179 = scalar_lea.hbm %s0, %s178
          %s181 = sshll.u32 %s179, 4
          %s182 = int_to_ptr.hbm [resolvable:$true] %s181
          %s183 = sshll.u32 %s174, 4
          %s184 = int_to_ptr.vmem [resolvable:$true] %s183
          %186 = dma.hbm_to_vmem [thread:$0]  %s182, 256, %s184, %s171
        $region24: #{tpu_custom_call.1} parent=19 // pred_fallthru
          _
      $region20: #{tpu_custom_call.1} parent=5 // pred_fallthru
        _
      %p187 = scmp.le.s32.totalorder 1, %s19
      %p188 = scmp.lt.s32.totalorder %s19, 5
      %p189 = pnand %p187, %p188
      %p190 = pneg %p189
      // Predicated region
      $region25: #{tpu_custom_call.1} parent=5 // pred_check
        _
      $region26: #{tpu_custom_call.1} parent=5 // pred_check_branch
        %192 = sbr.rel (%p189) target = $region28
      $region27: #{tpu_custom_call.1} parent=5 // pred_region
        %s193 = ssub.s32 %s19, 1
        %s194 = sand.u32 %s32, 1
        %s195 = scalar_lea.sflag [#allocation3], %s194
        %s196 = sand.u32 %s32, 1
        %s197 = smul.addr %s196, 16
        %s198 = scalar_lea.vmem [#allocation2], %s197
        // Predicated region
        $region29: #{tpu_custom_call.1} parent=27 // pred_check
          %p199 = pneg %p45
        $region30: #{tpu_custom_call.1} parent=27 // pred_check_branch
          %201 = sbr.rel (%p199) target = $region32
        $region31: #{tpu_custom_call.1} parent=27 // pred_region
          %203 = dma.done %s195, 256
        $region32: #{tpu_custom_call.1} parent=27 // pred_fallthru
          _
        // Predicated region
        $region33: #{tpu_custom_call.1} parent=27 // pred_check
          %p204 = pneg %p66
        $region34: #{tpu_custom_call.1} parent=27 // pred_check_branch
          %206 = sbr.rel (%p204) target = $region36
        $region35: #{tpu_custom_call.1} parent=27 // pred_region
          %208 = dma.done [#allocation6], 3072
        $region36: #{tpu_custom_call.1} parent=27 // pred_fallthru
          _
        %s209 = sand.u32 %s32, 1
        %s210 = scalar_lea.sflag [#allocation3], %s209
        %s211 = sand.u32 %s32, 1
        %s212 = smul.addr %s211, 16
        %s213 = scalar_lea.vmem [#allocation2], %s212
        %p214 = pneg %p45
        %p215 = pneg %p42
        %p216 = pneg %p66
        %p217 = pneg %p63
        %p218 = pneg %p92
        %p219 = pneg %p89
        %s220 = sand.u32 %s79, 1
        %s221 = scalar_lea.sflag [#allocation4], %s220
        %s222 = sand.u32 %s79, 1
        %s223 = smul.addr %s222, 8
        %s224 = scalar_lea.vmem [#allocation7], %s223
        %p225 = pneg %p113
        %p226 = pneg %p110
        %p227 = pneg %p134
        %p228 = pneg %p131
        %p229 = scmp.eq.s32.totalorder %s24, 0
        // Predicated region
        $region37: #{tpu_custom_call.1} parent=27 // pred_check
          %p230 = pneg %p229
        $region38: #{tpu_custom_call.1} parent=27 // pred_check_branch
          %232 = sbr.rel (%p230) target = $region40
        $region39: #{tpu_custom_call.1} parent=27 // pred_region
          %233 = vst [vmem:[#allocation8] sm:$0x1] 0.0
          %234 = vst [vmem:[#allocation10] sm:$0x1] 0.0
        $region40: #{tpu_custom_call.1} parent=27 // pred_fallthru
          _
        %v235 = vld [vmem:[%s198] sm:$0xff]
        %v236 = vld [vmem:[%s198 + $0x8] sm:$0xff]
        %v237 = vld [vmem:[#allocation5] sm:$0xff]
        %v238 = vld [vmem:[#allocation5 + $0x8] sm:$0xff]
        %v239 = vld [vmem:[#allocation5 + $0x10] sm:$0xff]
        %v240 = vld [vmem:[#allocation5 + $0x18] sm:$0xff]
        %v241 = vld [vmem:[#allocation5 + $0x20] sm:$0xff]
        %v242 = vld [vmem:[#allocation5 + $0x28] sm:$0xff]
        %v243 = vld [vmem:[#allocation5 + $0x30] sm:$0xff]
        %v244 = vld [vmem:[#allocation5 + $0x38] sm:$0xff]
        %v245 = vld [vmem:[#allocation5 + $0x40] sm:$0xff]
        %v246 = vld [vmem:[#allocation5 + $0x48] sm:$0xff]
        %v247 = vld [vmem:[#allocation5 + $0x50] sm:$0xff]
        %v248 = vld [vmem:[#allocation5 + $0x58] sm:$0xff]
        %v249 = vld [vmem:[#allocation5 + $0x60] sm:$0xff]
        %v250 = vld [vmem:[#allocation5 + $0x68] sm:$0xff]
        %v251 = vld [vmem:[#allocation5 + $0x70] sm:$0xff]
        %v252 = vld [vmem:[#allocation5 + $0x78] sm:$0xff]
        %v253 = vld [vmem:[#allocation5 + $0x80] sm:$0xff]
        %v254 = vld [vmem:[#allocation5 + $0x88] sm:$0xff]
        %v255 = vld [vmem:[#allocation5 + $0x90] sm:$0xff]
        %v256 = vld [vmem:[#allocation5 + $0x98] sm:$0xff]
        %v257 = vld [vmem:[#allocation5 + $0xa0] sm:$0xff]
        %v258 = vld [vmem:[#allocation5 + $0xa8] sm:$0xff]
        %v259 = vld [vmem:[#allocation5 + $0xb0] sm:$0xff]
        %v260 = vld [vmem:[#allocation5 + $0xb8] sm:$0xff]
        %vm261 = vcmask 523264
        %v263 = vsel %vm261, %v236, 0
        %265 = vmatpush.msra.mxu0 %v252
        %266 = vmatpush.msra.mxu0 %v251
        %267 = vmatpush.msra.mxu0 %v250
        %268 = vmatpush.msra.mxu0 %v249
        %269 = vmatpush.msra.mxu0 %v248
        %270 = vmatpush.msra.mxu0 %v247
        %271 = vmatpush.msra.mxu0 %v246
        %272 = vmatpush.msra.mxu0 %v245
        %273 = vmatpush.msra.mxu0 %v244
        %274 = vmatpush.msra.mxu0 %v243
        %275 = vmatpush.msra.mxu0 %v242
        %276 = vmatpush.msra.mxu0 %v241
        %277 = vmatpush.msra.mxu0 %v240
        %278 = vmatpush.msra.mxu0 %v239
        %279 = vmatpush.msra.mxu0 %v238
        %280 = vmatpush.msra.mxu0 %v237
        %281 = vmatmul.f32.gmra.mxu0 %v235
        %v282 = vpop.f32.mrf.mxu0
        %v283 = vadd.f32 0.0, %v282
        %284 = vdwg.mxu0
        %285 = vmatpush.msra.mxu0 0.0
        %286 = vmatpush.msra.mxu0 0.0
        %287 = vmatpush.msra.mxu0 0.0
        %288 = vmatpush.msra.mxu0 0.0
        %289 = vmatpush.msra.mxu0 0.0
        %290 = vmatpush.msra.mxu0 0.0
        %291 = vmatpush.msra.mxu0 0.0
        %292 = vmatpush.msra.mxu0 0.0
        %293 = vmatpush.msra.mxu0 %v260
        %294 = vmatpush.msra.mxu0 %v259
        %295 = vmatpush.msra.mxu0 %v258
        %296 = vmatpush.msra.mxu0 %v257
        %297 = vmatpush.msra.mxu0 %v256
        %298 = vmatpush.msra.mxu0 %v255
        %299 = vmatpush.msra.mxu0 %v254
        %300 = vmatpush.msra.mxu0 %v253
        %301 = vmatmul.f32.gmra.mxu0 %v263
        %v302 = vpop.f32.mrf.mxu0
        %v303 = vadd.f32 %v283, %v302
        %304 = vdwg.mxu0
        %305 = vst [vmem:[%s224] sm:$0xff] %v303
        %v306 = vld [vmem:[#allocation8] sm:$0x1]
        %v307 = vrot.slane %v303, 4
        %v308 = vadd.f32 %v303, %v307
        %v309 = vrot.slane %v308, 2
        %v310 = vadd.f32 %v308, %v309
        %v311 = vrot.slane %v310, 1
        %v312 = vadd.f32 %v310, %v311
        %v313 = vadd.f32 %v306, %v312
        %314 = vst [vmem:[#allocation8] sm:$0x1] %v313
        %v315 = vld [vmem:[#allocation10] sm:$0x1]
        %v316 = vmul.f32 %v303, %v303
        %v317 = vrot.slane %v316, 4
        %v318 = vadd.f32 %v316, %v317
        %v319 = vrot.slane %v318, 2
        %v320 = vadd.f32 %v318, %v319
        %v321 = vrot.slane %v320, 1
        %v322 = vadd.f32 %v320, %v321
        %v323 = vadd.f32 %v315, %v322
        %324 = vst [vmem:[#allocation10] sm:$0x1] %v323
        %s325 = sand.u32 %s79, 1
        %s326 = scalar_lea.sflag [#allocation4], %s325
        %s327 = sand.u32 %s79, 1
        %s328 = smul.addr %s327, 8
        %s329 = scalar_lea.vmem [#allocation7], %s328
        // Predicated region
        $region41: #{tpu_custom_call.1} parent=27 // pred_check
          %p330 = pneg %p89
        $region42: #{tpu_custom_call.1} parent=27 // pred_check_branch
          %332 = sbr.rel (%p330) target = $region44
        $region43: #{tpu_custom_call.1} parent=27 // pred_region
          %334 = vsyncadd %s326, 0
          %s335 = smul.addr %s24, 8
          %s336 = scalar_lea.hbm %s2, %s335
          %s338 = sshll.u32 %s329, 4
          %s339 = int_to_ptr.vmem [resolvable:$true] %s338
          %s340 = sshll.u32 %s336, 4
          %s341 = int_to_ptr.hbm [resolvable:$true] %s340
          %343 = dma.vmem_to_hbm [thread:$0]  %s339, 128, %s341, %s326
        $region44: #{tpu_custom_call.1} parent=27 // pred_fallthru
          _
        // Predicated region
        $region45: #{tpu_custom_call.1} parent=27 // pred_check
          %p344 = pneg %p110
        $region46: #{tpu_custom_call.1} parent=27 // pred_check_branch
          %346 = sbr.rel (%p344) target = $region48
        $region47: #{tpu_custom_call.1} parent=27 // pred_region
          %348 = vsyncadd [#allocation9], 0
          %s350 = sshll.u32 [#allocation8], 4
          %s351 = int_to_ptr.vmem [resolvable:$true] %s350
          %s352 = sshll.u32 %s3, 4
          %s353 = int_to_ptr.hbm [resolvable:$true] %s352
          %355 = dma.vmem_to_hbm [thread:$0]  %s351, 16, %s353, [#allocation9]
        $region48: #{tpu_custom_call.1} parent=27 // pred_fallthru
          _
        // Predicated region
        $region49: #{tpu_custom_call.1} parent=27 // pred_check
          %p356 = pneg %p131
        $region50: #{tpu_custom_call.1} parent=27 // pred_check_branch
          %358 = sbr.rel (%p356) target = $region52
        $region51: #{tpu_custom_call.1} parent=27 // pred_region
          %360 = vsyncadd [#allocation9], 0
          %s362 = sshll.u32 [#allocation10], 4
          %s363 = int_to_ptr.vmem [resolvable:$true] %s362
          %s364 = sshll.u32 %s4, 4
          %s365 = int_to_ptr.hbm [resolvable:$true] %s364
          %367 = dma.vmem_to_hbm [thread:$0]  %s363, 16, %s365, [#allocation9]
        $region52: #{tpu_custom_call.1} parent=27 // pred_fallthru
          _
        // Predicated region
        $region53: #{tpu_custom_call.1} parent=27 // pred_check
          %p368 = pneg %p110
        $region54: #{tpu_custom_call.1} parent=27 // pred_check_branch
          %370 = sbr.rel (%p368) target = $region56
        $region55: #{tpu_custom_call.1} parent=27 // pred_region
          %372 = dma.done [#allocation9], 16
        $region56: #{tpu_custom_call.1} parent=27 // pred_fallthru
          _
        // Predicated region
        $region57: #{tpu_custom_call.1} parent=27 // pred_check
          %p373 = pneg %p131
        $region58: #{tpu_custom_call.1} parent=27 // pred_check_branch
          %375 = sbr.rel (%p373) target = $region60
        $region59: #{tpu_custom_call.1} parent=27 // pred_region
          %377 = dma.done [#allocation9], 16
        $region60: #{tpu_custom_call.1} parent=27 // pred_fallthru
          _
      $region28: #{tpu_custom_call.1} parent=5 // pred_fallthru
        _
      %p378 = scmp.le.s32.totalorder 2, %s19
      // Predicated region
      $region61: #{tpu_custom_call.1} parent=5 // pred_check
        %p379 = pneg %p378
      $region62: #{tpu_custom_call.1} parent=5 // pred_check_branch
        %381 = sbr.rel (%p379) target = $region64
      $region63: #{tpu_custom_call.1} parent=5 // pred_region
        %s382 = ssub.s32 %s19, 2
        // Predicated region
        $region65: #{tpu_custom_call.1} parent=63 // pred_check
          %p383 = pneg %p95
        $region66: #{tpu_custom_call.1} parent=63 // pred_check_branch
          %385 = sbr.rel (%p383) target = $region68
        $region67: #{tpu_custom_call.1} parent=63 // pred_region
          %s386 = sand.u32 %s80, 1
          %s387 = scalar_lea.sflag [#allocation4], %s386
          %s388 = sand.u32 %s80, 1
          %s389 = smul.addr %s388, 8
          %s390 = scalar_lea.vmem [#allocation7], %s389
          %392 = dma.done %s387, 128
        $region68: #{tpu_custom_call.1} parent=63 // pred_fallthru
          _
      $region64: #{tpu_custom_call.1} parent=5 // pred_fallthru
        _
    $region6: #{tpu_custom_call.1} parent=1 // loop_footer
      %s23 = sadd.s32 1, %s19
    $region7: #{tpu_custom_call.1} parent=1 // loop_footer_branch
      %18 = sbr.rel target = $region3
    $region8: #{tpu_custom_call.1} parent=1 // loop_exit
      _
    %393 = vsyncpa [#allocation3], 1
    %s394 = scalar_lea.sflag [#allocation3], 1
    %395 = vsyncpa %s394, 1
    %396 = vsyncpa [#allocation6], 1
    %397 = vsyncpa [#allocation4], 1
    %s398 = scalar_lea.sflag [#allocation4], 1
    %399 = vsyncpa %s398, 1
    %400 = vsyncpa [#allocation9], 1

</llo_original>
